<compile_context>
chip_gen: v5e
topology: v5e:2x2
jax: 0.10.0
libtpu: 0.0.40
codegen_flags: <defaults>
</compile_context>

<pallas_src>
import numpy as np
import jax
import jax.numpy as jnp
from jax.experimental import pallas as pl
from jax.experimental.pallas import tpu as pltpu

BN_EPS = 1e-5
RMS_EPS = 1e-7


def _round_up(n, m):
    return ((n + m - 1) // m) * m


# ----------------------------------------------------------------------------
# One-time parameter setup: grouped-conv -> structured matmul, BN folding,
# lane padding to 128, packing into slabs.  (Plain XLA, runs once.)
# ----------------------------------------------------------------------------
def fold_and_pad_params(p, inch, nchs_orig):
    nlayers = len(nchs_orig)
    ka, kb = 8 * inch, inch * inch
    P = max(_round_up(n, 128) for n in nchs_orig)          # lane-dense hidden width

    # --- grouped Conv1d(k=1, groups=inch) as a block-diagonal dense matmul ----
    # (x @ Wproj)[b, c*8 + f]        = x[b, c] * conv_w[c, f]        (standalone half)
    # (x @ Wproj)[b, ka + c*8 + f]   = x[b, c] * conv_w[c, 8 + f]    (attention half)
    cw, cb = p["conv_w"], p["conv_b"]                      # (inch, 16)
    eye = jnp.eye(inch, dtype=jnp.float32)

    def block(half):                                       # (inch, inch*8)
        blk = eye[:, :, None] * cw[None, :, half * 8:(half + 1) * 8]
        return blk.reshape(inch, inch * 8)

    wproj = jnp.concatenate([block(0), block(1)], axis=1)                 # (inch, 16*inch)
    bproj = jnp.concatenate([cb[:, :8].reshape(1, -1),
                             cb[:, 8:].reshape(1, -1)], axis=1)           # (1, 16*inch)

    # --- fold eval-mode BatchNorm into the Linear layers, zero-pad to P -------
    ws, bs_ = [], []
    for i in range(nlayers):
        w, b = p[f"w{i}"], p[f"b{i}"]
        if i < nlayers - 1:
            s = p[f"bn{i}_g"] * jax.lax.rsqrt(p[f"bn{i}_v"] + BN_EPS)
            w = w * s[None, :]
            b = (b - p[f"bn{i}_m"]) * s + p[f"bn{i}_b"]
        ws.append(w)
        bs_.append(b)

    def pad_to(a, rows, cols):
        return jnp.pad(a, ((0, rows - a.shape[0]), (0, cols - a.shape[1])))

    w0 = pad_to(ws[0], ka + kb, P)                                        # (ka+kb, P)
    if nlayers > 1:
        wrest = jnp.concatenate([pad_to(w, P, P) for w in ws[1:]], axis=0)  # ((L-1)*P, P)
    else:
        wrest = jnp.zeros((P, P), jnp.float32)            # placeholder (unused)
    bmlp = jnp.concatenate(
        [jnp.pad(b, (0, P - b.shape[0]))[None, :] for b in bs_], axis=1)  # (1, L*P)

    return dict(wproj=wproj, bproj=bproj, w0=w0, wrest=wrest, bmlp=bmlp,
                inch=inch, nlayers=nlayers, P=P, n_out=nchs_orig[-1])


# ----------------------------------------------------------------------------
# Fused forward kernel
# ----------------------------------------------------------------------------
def forward(x, pp):
    bs, inch = x.shape
    ka = 8 * inch
    nlayers, P, n_out = pp["nlayers"], pp["P"], pp["n_out"]

    tb = bs if bs <= 256 else 256            # batch row tile (full batch at toy sizes)
    grid = (pl.cdiv(bs, tb),)

    def kernel(x_ref, wproj_ref, bproj_ref, w0_ref, wrest_ref, bmlp_ref, out_ref):
        xv = x_ref[...]                                                  # (tb, inch)

        # Grouped Conv1d(k=1) + ReLU, as a structured matmul.
        e = jnp.dot(xv, wproj_ref[...], preferred_element_type=jnp.float32)
        e = jnp.maximum(e + bproj_ref[...], 0.0)                         # (tb, 16*inch)
        e_sa = e[:, :ka]                                                 # features 0..7
        e_att = e[:, ka:]                                                # features 8..15

        # Per-feature RMS normalization over the channel axis (eps outside sqrt).
        def rms_normalize(v):                                            # v: (tb, 8*inch)
            sq = v * v
            ms = sq[:, 0:8]
            for c in range(1, inch):
                ms = ms + sq[:, c * 8:(c + 1) * 8]
            denom = jnp.sqrt(ms * (1.0 / inch)) + RMS_EPS                # (tb, 8)
            return v / jnp.concatenate([denom] * inch, axis=1)

        e_sa = rms_normalize(e_sa)                                       # standalone, flat
        e_att = rms_normalize(e_att)

        # Gram matrix bmm(A, A^T) on the VPU/XLU: unrolled multiply + lane reduce.
        a = [e_att[:, c * 8:(c + 1) * 8] for c in range(inch)]           # (tb, 8) each
        gram_cols = [jnp.sum(a[i] * a[j], axis=1, keepdims=True)         # (tb, 1)
                     for i in range(inch) for j in range(inch)]

        # Concatenated classifier features: [standalone.flatten | gram.flatten].
        feat = jnp.concatenate([e_sa] + gram_cols, axis=1)               # (tb, ka+inch^2)

        # MLP (BatchNorm already folded into weights; everything 128-lane padded).
        h = jnp.dot(feat, w0_ref[...], preferred_element_type=jnp.float32)
        h = h + bmlp_ref[:, 0:P]
        for i in range(1, nlayers):
            h = jnp.maximum(h, 0.0)                                      # ReLU (+ eval dropout)
            wi = wrest_ref[(i - 1) * P:i * P, :]
            h = jnp.dot(h, wi, preferred_element_type=jnp.float32)
            h = h + bmlp_ref[:, i * P:(i + 1) * P]
        out_ref[...] = h                                                 # (tb, P) lane-dense

    out_padded = pl.pallas_call(
        kernel,
        out_shape=jax.ShapeDtypeStruct((bs, P), jnp.float32),
        grid=grid,
        in_specs=[
            pl.BlockSpec((tb, inch), lambda i: (i, 0)),
            pl.BlockSpec(pp["wproj"].shape, lambda i: (0, 0)),
            pl.BlockSpec(pp["bproj"].shape, lambda i: (0, 0)),
            pl.BlockSpec(pp["w0"].shape, lambda i: (0, 0)),
            pl.BlockSpec(pp["wrest"].shape, lambda i: (0, 0)),
            pl.BlockSpec(pp["bmlp"].shape, lambda i: (0, 0)),
        ],
        out_specs=pl.BlockSpec((tb, P), lambda i: (i, 0)),
        compiler_params=pltpu.CompilerParams(
            dimension_semantics=("parallel",)),       # megacore sharding when grid > 1
    )(x, pp["wproj"], pp["bproj"], pp["w0"], pp["wrest"], pp["bmlp"])

    return out_padded[:, :n_out]


# ----------------------------------------------------------------------------
# Pure-JAX reference (same math, no Pallas) for correctness check
# ----------------------------------------------------------------------------
def reference(x, p):
    bs, inch = x.shape
    emb = x[:, :, None] * p["conv_w"][None] + p["conv_b"][None]
    emb = jnp.maximum(emb, 0.0)
    ms = jnp.mean(emb * emb, axis=1, keepdims=True)
    emb = emb / (jnp.sqrt(ms) + RMS_EPS)
    standalone = emb[:, :, :8].reshape(bs, inch * 8)
    att_in = emb[:, :, 8:]
    att = jnp.einsum("bid,bjd->bij", att_in, att_in).reshape(bs, inch * inch)
    h = jnp.concatenate([standalone, att], axis=1)
    nlayers = sum(1 for k in p if k.startswith("w"))
    for i in range(nlayers):
        h = h @ p[f"w{i}"] + p[f"b{i}"]
        if i < nlayers - 1:
            h = (h - p[f"bn{i}_m"]) / jnp.sqrt(p[f"bn{i}_v"] + BN_EPS) \
                * p[f"bn{i}_g"] + p[f"bn{i}_b"]
            h = jnp.maximum(h, 0.0)
    return h


# ----------------------------------------------------------------------------
# Deterministic parameter construction (shapes follow the module __init__)
# ----------------------------------------------------------------------------
def init_params(key, inch, nchs_orig):
    d0 = 8 * inch + inch * inch
    dims = [d0] + list(nchs_orig)
    nlin = len(dims) - 1
    keys = jax.random.split(key, 2 + 6 * nlin)
    p = {}
    # Conv1d(inch, inch*16, 1, groups=inch): weight (inch*16,1,1) stored as (inch,16)
    p["conv_w"] = 0.5 * jax.random.normal(keys[0], (inch, 16), jnp.float32)
    p["conv_b"] = 0.1 * jax.random.normal(keys[1], (inch, 16), jnp.float32)
    k = 2
    for i in range(nlin):
        fan_in = dims[i]
        p[f"w{i}"] = jax.random.normal(keys[k], (dims[i], dims[i + 1]),
                                       jnp.float32) / np.sqrt(fan_in); k += 1
        p[f"b{i}"] = 0.1 * jax.random.normal(keys[k], (dims[i + 1],), jnp.float32); k += 1
        if i < nlin - 1:
            n = dims[i + 1]
            p[f"bn{i}_g"] = 1.0 + 0.1 * jax.random.normal(keys[k], (n,), jnp.float32); k += 1
            p[f"bn{i}_b"] = 0.1 * jax.random.normal(keys[k], (n,), jnp.float32); k += 1
            p[f"bn{i}_m"] = 0.1 * jax.random.normal(keys[k], (n,), jnp.float32); k += 1
            p[f"bn{i}_v"] = 1.0 + 0.5 * jax.random.uniform(keys[k], (n,), jnp.float32); k += 1
    return p


if __name__ == "__main__":
    bs, inch = 8, 4
    nchs_orig = [32, 16, 3]               # two hidden layers + output layer
    key = jax.random.PRNGKey(0)
    kx, kp = jax.random.split(key)
    x = jax.random.normal(kx, (bs, inch), jnp.float32)
    params = init_params(kp, inch, nchs_orig)

    pp = fold_and_pad_params(params, inch, nchs_orig)   # one-time setup (fold + pad + pack)
    out = jax.block_until_ready(forward(x, pp))

    ref = reference(x, params)
    np.testing.assert_allclose(np.asarray(out), np.asarray(ref), rtol=2e-2, atol=2e-2)
    assert out.shape == (bs, nchs_orig[-1])
    print("KERNEL_OK")
</pallas_src>

<mosaic_0001>
module attributes {stable_mosaic.version = 11 : i64} {
  func.func @kernel(%arg0: i32, %arg1: memref<8x4xf32, #tpu.memory_space<vmem>>, %arg2: memref<4x64xf32, #tpu.memory_space<vmem>>, %arg3: memref<1x64xf32, #tpu.memory_space<vmem>>, %arg4: memref<48x128xf32, #tpu.memory_space<vmem>>, %arg5: memref<256x128xf32, #tpu.memory_space<vmem>>, %arg6: memref<1x384xf32, #tpu.memory_space<vmem>>, %arg7: memref<8x128xf32, #tpu.memory_space<vmem>>) attributes {dimension_semantics = [#tpu.dimension_semantics<parallel>], iteration_bounds = array<i64: 1>, scalar_prefetch = 0 : i64, scratch_operands = 0 : i64, tpu.core_type = #tpu.core_type<tc>, window_params = [{transform_indices = @transform_0, window_bounds = array<i64: 8, 4>}, {pipeline_mode = #tpu.pipeline_mode<synchronous>, transform_indices = @transform_1, window_bounds = array<i64: 4, 64>}, {pipeline_mode = #tpu.pipeline_mode<synchronous>, transform_indices = @transform_2, window_bounds = array<i64: 1, 64>}, {pipeline_mode = #tpu.pipeline_mode<synchronous>, transform_indices = @transform_3, window_bounds = array<i64: 48, 128>}, {pipeline_mode = #tpu.pipeline_mode<synchronous>, transform_indices = @transform_4, window_bounds = array<i64: 256, 128>}, {pipeline_mode = #tpu.pipeline_mode<synchronous>, transform_indices = @transform_5, window_bounds = array<i64: 1, 384>}, {transform_indices = @transform_6, window_bounds = array<i64: 8, 128>}]} {
    %c0 = arith.constant 0 : index
    %c0_0 = arith.constant 0 : index
    %0 = vector.load %arg1[%c0, %c0_0] : memref<8x4xf32, #tpu.memory_space<vmem>>, vector<8x4xf32>
    %c0_1 = arith.constant 0 : index
    %c0_2 = arith.constant 0 : index
    %1 = vector.load %arg2[%c0_1, %c0_2] : memref<4x64xf32, #tpu.memory_space<vmem>>, vector<4x64xf32>
    %cst = arith.constant dense<0.000000e+00> : vector<8x64xf32>
    %2 = tpu.matmul %0, %1, %cst {dimension_numbers = #tpu.dot_dimension_numbers<[1], [0], [0], [1], [0, 0, 1, 1], [], []>} : vector<8x4xf32>, vector<4x64xf32>, vector<8x64xf32> -> vector<8x64xf32>
    %c0_3 = arith.constant 0 : index
    %c0_4 = arith.constant 0 : index
    %3 = vector.load %arg3[%c0_3, %c0_4] : memref<1x64xf32, #tpu.memory_space<vmem>>, vector<1x64xf32>
    %4 = vector.broadcast %3 : vector<1x64xf32> to vector<8x64xf32>
    %5 = arith.addf %2, %4 : vector<8x64xf32>
    %cst_5 = arith.constant 0.000000e+00 : f32
    %6 = vector.broadcast %cst_5 : f32 to vector<8x64xf32>
    %7 = arith.maximumf %5, %6 : vector<8x64xf32>
    %8 = vector.extract_strided_slice %7 {offsets = [0, 0], sizes = [8, 32], strides = [1, 1]} : vector<8x64xf32> to vector<8x32xf32>
    %9 = vector.extract_strided_slice %7 {offsets = [0, 32], sizes = [8, 32], strides = [1, 1]} : vector<8x64xf32> to vector<8x32xf32>
    %10 = arith.mulf %8, %8 : vector<8x32xf32>
    %11 = vector.extract_strided_slice %10 {offsets = [0, 0], sizes = [8, 8], strides = [1, 1]} : vector<8x32xf32> to vector<8x8xf32>
    %12 = vector.extract_strided_slice %10 {offsets = [0, 8], sizes = [8, 8], strides = [1, 1]} : vector<8x32xf32> to vector<8x8xf32>
    %13 = arith.addf %11, %12 : vector<8x8xf32>
    %14 = vector.extract_strided_slice %10 {offsets = [0, 16], sizes = [8, 8], strides = [1, 1]} : vector<8x32xf32> to vector<8x8xf32>
    %15 = arith.addf %13, %14 : vector<8x8xf32>
    %16 = vector.extract_strided_slice %10 {offsets = [0, 24], sizes = [8, 8], strides = [1, 1]} : vector<8x32xf32> to vector<8x8xf32>
    %17 = arith.addf %15, %16 : vector<8x8xf32>
    %cst_6 = arith.constant 2.500000e-01 : f32
    %18 = vector.broadcast %cst_6 : f32 to vector<8x8xf32>
    %19 = arith.mulf %17, %18 : vector<8x8xf32>
    %20 = math.sqrt %19 : vector<8x8xf32>
    %cst_7 = arith.constant 1.000000e-07 : f32
    %21 = vector.broadcast %cst_7 : f32 to vector<8x8xf32>
    %22 = arith.addf %20, %21 : vector<8x8xf32>
    %23 = tpu.concatenate %22, %22, %22, %22 in 1 : vector<8x8xf32>, vector<8x8xf32>, vector<8x8xf32>, vector<8x8xf32> -> vector<8x32xf32>
    %24 = arith.divf %8, %23 : vector<8x32xf32>
    %25 = arith.mulf %9, %9 : vector<8x32xf32>
    %26 = vector.extract_strided_slice %25 {offsets = [0, 0], sizes = [8, 8], strides = [1, 1]} : vector<8x32xf32> to vector<8x8xf32>
    %27 = vector.extract_strided_slice %25 {offsets = [0, 8], sizes = [8, 8], strides = [1, 1]} : vector<8x32xf32> to vector<8x8xf32>
    %28 = arith.addf %26, %27 : vector<8x8xf32>
    %29 = vector.extract_strided_slice %25 {offsets = [0, 16], sizes = [8, 8], strides = [1, 1]} : vector<8x32xf32> to vector<8x8xf32>
    %30 = arith.addf %28, %29 : vector<8x8xf32>
    %31 = vector.extract_strided_slice %25 {offsets = [0, 24], sizes = [8, 8], strides = [1, 1]} : vector<8x32xf32> to vector<8x8xf32>
    %32 = arith.addf %30, %31 : vector<8x8xf32>
    %cst_8 = arith.constant 2.500000e-01 : f32
    %33 = vector.broadcast %cst_8 : f32 to vector<8x8xf32>
    %34 = arith.mulf %32, %33 : vector<8x8xf32>
    %35 = math.sqrt %34 : vector<8x8xf32>
    %cst_9 = arith.constant 1.000000e-07 : f32
    %36 = vector.broadcast %cst_9 : f32 to vector<8x8xf32>
    %37 = arith.addf %35, %36 : vector<8x8xf32>
    %38 = tpu.concatenate %37, %37, %37, %37 in 1 : vector<8x8xf32>, vector<8x8xf32>, vector<8x8xf32>, vector<8x8xf32> -> vector<8x32xf32>
    %39 = arith.divf %9, %38 : vector<8x32xf32>
    %40 = vector.extract_strided_slice %39 {offsets = [0, 0], sizes = [8, 8], strides = [1, 1]} : vector<8x32xf32> to vector<8x8xf32>
    %41 = vector.extract_strided_slice %39 {offsets = [0, 8], sizes = [8, 8], strides = [1, 1]} : vector<8x32xf32> to vector<8x8xf32>
    %42 = vector.extract_strided_slice %39 {offsets = [0, 16], sizes = [8, 8], strides = [1, 1]} : vector<8x32xf32> to vector<8x8xf32>
    %43 = vector.extract_strided_slice %39 {offsets = [0, 24], sizes = [8, 8], strides = [1, 1]} : vector<8x32xf32> to vector<8x8xf32>
    %44 = arith.mulf %40, %40 : vector<8x8xf32>
    %cst_10 = arith.constant dense<0.000000e+00> : vector<8xf32>
    %45 = vector.multi_reduction <add>, %44, %cst_10 [1] : vector<8x8xf32> to vector<8xf32>
    %46 = vector.shape_cast %45 : vector<8xf32> to vector<8x1xf32>
    %47 = arith.mulf %40, %41 : vector<8x8xf32>
    %cst_11 = arith.constant dense<0.000000e+00> : vector<8xf32>
    %48 = vector.multi_reduction <add>, %47, %cst_11 [1] : vector<8x8xf32> to vector<8xf32>
    %49 = vector.shape_cast %48 : vector<8xf32> to vector<8x1xf32>
    %50 = arith.mulf %40, %42 : vector<8x8xf32>
    %cst_12 = arith.constant dense<0.000000e+00> : vector<8xf32>
    %51 = vector.multi_reduction <add>, %50, %cst_12 [1] : vector<8x8xf32> to vector<8xf32>
    %52 = vector.shape_cast %51 : vector<8xf32> to vector<8x1xf32>
    %53 = arith.mulf %40, %43 : vector<8x8xf32>
    %cst_13 = arith.constant dense<0.000000e+00> : vector<8xf32>
    %54 = vector.multi_reduction <add>, %53, %cst_13 [1] : vector<8x8xf32> to vector<8xf32>
    %55 = vector.shape_cast %54 : vector<8xf32> to vector<8x1xf32>
    %56 = arith.mulf %41, %40 : vector<8x8xf32>
    %cst_14 = arith.constant dense<0.000000e+00> : vector<8xf32>
    %57 = vector.multi_reduction <add>, %56, %cst_14 [1] : vector<8x8xf32> to vector<8xf32>
    %58 = vector.shape_cast %57 : vector<8xf32> to vector<8x1xf32>
    %59 = arith.mulf %41, %41 : vector<8x8xf32>
    %cst_15 = arith.constant dense<0.000000e+00> : vector<8xf32>
    %60 = vector.multi_reduction <add>, %59, %cst_15 [1] : vector<8x8xf32> to vector<8xf32>
    %61 = vector.shape_cast %60 : vector<8xf32> to vector<8x1xf32>
    %62 = arith.mulf %41, %42 : vector<8x8xf32>
    %cst_16 = arith.constant dense<0.000000e+00> : vector<8xf32>
    %63 = vector.multi_reduction <add>, %62, %cst_16 [1] : vector<8x8xf32> to vector<8xf32>
    %64 = vector.shape_cast %63 : vector<8xf32> to vector<8x1xf32>
    %65 = arith.mulf %41, %43 : vector<8x8xf32>
    %cst_17 = arith.constant dense<0.000000e+00> : vector<8xf32>
    %66 = vector.multi_reduction <add>, %65, %cst_17 [1] : vector<8x8xf32> to vector<8xf32>
    %67 = vector.shape_cast %66 : vector<8xf32> to vector<8x1xf32>
    %68 = arith.mulf %42, %40 : vector<8x8xf32>
    %cst_18 = arith.constant dense<0.000000e+00> : vector<8xf32>
    %69 = vector.multi_reduction <add>, %68, %cst_18 [1] : vector<8x8xf32> to vector<8xf32>
    %70 = vector.shape_cast %69 : vector<8xf32> to vector<8x1xf32>
    %71 = arith.mulf %42, %41 : vector<8x8xf32>
    %cst_19 = arith.constant dense<0.000000e+00> : vector<8xf32>
    %72 = vector.multi_reduction <add>, %71, %cst_19 [1] : vector<8x8xf32> to vector<8xf32>
    %73 = vector.shape_cast %72 : vector<8xf32> to vector<8x1xf32>
    %74 = arith.mulf %42, %42 : vector<8x8xf32>
    %cst_20 = arith.constant dense<0.000000e+00> : vector<8xf32>
    %75 = vector.multi_reduction <add>, %74, %cst_20 [1] : vector<8x8xf32> to vector<8xf32>
    %76 = vector.shape_cast %75 : vector<8xf32> to vector<8x1xf32>
    %77 = arith.mulf %42, %43 : vector<8x8xf32>
    %cst_21 = arith.constant dense<0.000000e+00> : vector<8xf32>
    %78 = vector.multi_reduction <add>, %77, %cst_21 [1] : vector<8x8xf32> to vector<8xf32>
    %79 = vector.shape_cast %78 : vector<8xf32> to vector<8x1xf32>
    %80 = arith.mulf %43, %40 : vector<8x8xf32>
    %cst_22 = arith.constant dense<0.000000e+00> : vector<8xf32>
    %81 = vector.multi_reduction <add>, %80, %cst_22 [1] : vector<8x8xf32> to vector<8xf32>
    %82 = vector.shape_cast %81 : vector<8xf32> to vector<8x1xf32>
    %83 = arith.mulf %43, %41 : vector<8x8xf32>
    %cst_23 = arith.constant dense<0.000000e+00> : vector<8xf32>
    %84 = vector.multi_reduction <add>, %83, %cst_23 [1] : vector<8x8xf32> to vector<8xf32>
    %85 = vector.shape_cast %84 : vector<8xf32> to vector<8x1xf32>
    %86 = arith.mulf %43, %42 : vector<8x8xf32>
    %cst_24 = arith.constant dense<0.000000e+00> : vector<8xf32>
    %87 = vector.multi_reduction <add>, %86, %cst_24 [1] : vector<8x8xf32> to vector<8xf32>
    %88 = vector.shape_cast %87 : vector<8xf32> to vector<8x1xf32>
    %89 = arith.mulf %43, %43 : vector<8x8xf32>
    %cst_25 = arith.constant dense<0.000000e+00> : vector<8xf32>
    %90 = vector.multi_reduction <add>, %89, %cst_25 [1] : vector<8x8xf32> to vector<8xf32>
    %91 = vector.shape_cast %90 : vector<8xf32> to vector<8x1xf32>
    %92 = tpu.concatenate %24, %46, %49, %52, %55, %58, %61, %64, %67, %70, %73, %76, %79, %82, %85, %88 in 1 : vector<8x32xf32>, vector<8x1xf32>, vector<8x1xf32>, vector<8x1xf32>, vector<8x1xf32>, vector<8x1xf32>, vector<8x1xf32>, vector<8x1xf32>, vector<8x1xf32>, vector<8x1xf32>, vector<8x1xf32>, vector<8x1xf32>, vector<8x1xf32>, vector<8x1xf32>, vector<8x1xf32>, vector<8x1xf32> -> vector<8x47xf32>
    %93 = tpu.concatenate %92, %91 in 1 : vector<8x47xf32>, vector<8x1xf32> -> vector<8x48xf32>
    %c0_26 = arith.constant 0 : index
    %c0_27 = arith.constant 0 : index
    %94 = vector.load %arg4[%c0_26, %c0_27] : memref<48x128xf32, #tpu.memory_space<vmem>>, vector<48x128xf32>
    %cst_28 = arith.constant dense<0.000000e+00> : vector<8x128xf32>
    %95 = tpu.matmul %93, %94, %cst_28 {dimension_numbers = #tpu.dot_dimension_numbers<[1], [0], [0], [1], [0, 0, 1, 1], [], []>} : vector<8x48xf32>, vector<48x128xf32>, vector<8x128xf32> -> vector<8x128xf32>
    %c0_29 = arith.constant 0 : index
    %c0_30 = arith.constant 0 : index
    %96 = vector.load %arg6[%c0_29, %c0_30] : memref<1x384xf32, #tpu.memory_space<vmem>>, vector<1x128xf32>
    %97 = vector.broadcast %96 : vector<1x128xf32> to vector<8x128xf32>
    %98 = arith.addf %95, %97 : vector<8x128xf32>
    %cst_31 = arith.constant 0.000000e+00 : f32
    %99 = vector.broadcast %cst_31 : f32 to vector<8x128xf32>
    %100 = arith.maximumf %98, %99 : vector<8x128xf32>
    %c0_32 = arith.constant 0 : index
    %c0_33 = arith.constant 0 : index
    %101 = vector.load %arg5[%c0_32, %c0_33] : memref<256x128xf32, #tpu.memory_space<vmem>>, vector<128x128xf32>
    %cst_34 = arith.constant dense<0.000000e+00> : vector<8x128xf32>
    %102 = tpu.matmul %100, %101, %cst_34 {dimension_numbers = #tpu.dot_dimension_numbers<[1], [0], [0], [1], [0, 0, 1, 1], [], []>} : vector<8x128xf32>, vector<128x128xf32>, vector<8x128xf32> -> vector<8x128xf32>
    %c0_35 = arith.constant 0 : index
    %c128 = arith.constant 128 : index
    %103 = vector.load %arg6[%c0_35, %c128] : memref<1x384xf32, #tpu.memory_space<vmem>>, vector<1x128xf32>
    %104 = vector.broadcast %103 : vector<1x128xf32> to vector<8x128xf32>
    %105 = arith.addf %102, %104 : vector<8x128xf32>
    %cst_36 = arith.constant 0.000000e+00 : f32
    %106 = vector.broadcast %cst_36 : f32 to vector<8x128xf32>
    %107 = arith.maximumf %105, %106 : vector<8x128xf32>
    %c128_37 = arith.constant 128 : index
    %c0_38 = arith.constant 0 : index
    %108 = vector.load %arg5[%c128_37, %c0_38] : memref<256x128xf32, #tpu.memory_space<vmem>>, vector<128x128xf32>
    %cst_39 = arith.constant dense<0.000000e+00> : vector<8x128xf32>
    %109 = tpu.matmul %107, %108, %cst_39 {dimension_numbers = #tpu.dot_dimension_numbers<[1], [0], [0], [1], [0, 0, 1, 1], [], []>} : vector<8x128xf32>, vector<128x128xf32>, vector<8x128xf32> -> vector<8x128xf32>
    %c0_40 = arith.constant 0 : index
    %c256 = arith.constant 256 : index
    %110 = vector.load %arg6[%c0_40, %c256] : memref<1x384xf32, #tpu.memory_space<vmem>>, vector<1x128xf32>
    %111 = vector.broadcast %110 : vector<1x128xf32> to vector<8x128xf32>
    %112 = arith.addf %109, %111 : vector<8x128xf32>
    %c0_41 = arith.constant 0 : index
    %c0_42 = arith.constant 0 : index
    %113 = vector.load %arg7[%c0_41, %c0_42] : memref<8x128xf32, #tpu.memory_space<vmem>>, vector<8x128xf32>
    tpu.vector_store %arg7[%c0_41, %c0_42], %112 {strides = array<i32>} : memref<8x128xf32, #tpu.memory_space<vmem>>, vector<8x128xf32>,
    return
  }
  func.func @transform_0(%arg0: i32) -> (i32, i32) {
    %c0_i32 = arith.constant 0 : i32
    %c0_i32_0 = arith.constant 0 : i32
    return %arg0, %c0_i32 : i32, i32
  }
  func.func @transform_1(%arg0: i32) -> (i32, i32) {
    %c0_i32 = arith.constant 0 : i32
    %c0_i32_0 = arith.constant 0 : i32
    %c0_i32_1 = arith.constant 0 : i32
    return %c0_i32, %c0_i32_0 : i32, i32
  }
  func.func @transform_2(%arg0: i32) -> (i32, i32) {
    %c0_i32 = arith.constant 0 : i32
    %c0_i32_0 = arith.constant 0 : i32
    %c0_i32_1 = arith.constant 0 : i32
    return %c0_i32, %c0_i32_0 : i32, i32
  }
  func.func @transform_3(%arg0: i32) -> (i32, i32) {
    %c0_i32 = arith.constant 0 : i32
    %c0_i32_0 = arith.constant 0 : i32
    %c0_i32_1 = arith.constant 0 : i32
    return %c0_i32, %c0_i32_0 : i32, i32
  }
  func.func @transform_4(%arg0: i32) -> (i32, i32) {
    %c0_i32 = arith.constant 0 : i32
    %c0_i32_0 = arith.constant 0 : i32
    %c0_i32_1 = arith.constant 0 : i32
    return %c0_i32, %c0_i32_0 : i32, i32
  }
  func.func @transform_5(%arg0: i32) -> (i32, i32) {
    %c0_i32 = arith.constant 0 : i32
    %c0_i32_0 = arith.constant 0 : i32
    %c0_i32_1 = arith.constant 0 : i32
    return %c0_i32, %c0_i32_0 : i32, i32
  }
  func.func @transform_6(%arg0: i32) -> (i32, i32) {
    %c0_i32 = arith.constant 0 : i32
    %c0_i32_0 = arith.constant 0 : i32
    return %arg0, %c0_i32 : i32, i32
  }
}

</mosaic_0001>

<llo_original>
// kernel: tpu_custom_call.1
$region0: #{tpu_custom_call.1}
  #allocation0 [shape = 'u32[]', space=smem, size = 0x4, offset = 0x4, fixed_abs, tag = 'smem constant byte address 0x4 - core index']
  #allocation1 [shape = 'u32[72,128]{1,0:T(1,128)}', space=vmem, size = 0x9000, scoped, tag = 'internal scratch']
  %s0 = inlined_call_operand.vmem [shape: f32[8,4], index: 0, kind: input, shape index: {}]
  %s1 = inlined_call_operand.vmem [shape: f32[4,64], index: 1, kind: input, shape index: {}]
  %s2 = inlined_call_operand.vmem [shape: f32[1,64], index: 2, kind: input, shape index: {}]
  %s3 = inlined_call_operand.hbm [shape: f32[48,128], index: 3, kind: input, shape index: {}]
  %s4 = inlined_call_operand.hbm [shape: f32[256,128], index: 4, kind: input, shape index: {}]
  %s5 = inlined_call_operand.vmem [shape: f32[1,384], index: 5, kind: input, shape index: {}]
  %s6 = inlined_call_operand.hbm [shape: f32[8,128], index: 6, kind: output, shape index: {}]
  %s7 = sld [smem:[#allocation0]]
  $region42: #{tpu_custom_call.1} parent=0
    _
  %s9 = ssub.s32 1, %s7
  %s10 = scalar_select 0, %s9, %s7
  $region1: #{tpu_custom_call.1} parent=0
    #allocation2 [shape = 'u8[24576]{0}', space=vmem, size = 0x6000, scoped, tag = 'input window, operand 3, single buffered']
    #allocation3 [shape = 's32[1]{0}', space=sflag, size = 0x4, scoped, tag = 'scoped memory for tpu_custom_call.1']
    #allocation4 [shape = 's32[1]{0}', space=sflag, size = 0x4, scoped, tag = 'scoped memory for tpu_custom_call.1']
    #allocation5 [shape = 'u8[131072]{0}', space=vmem, size = 0x20000, scoped, tag = 'input window, operand 4, single buffered']
    #allocation6 [shape = 's32[1]{0}', space=sflag, size = 0x4, scoped, tag = 'scoped memory for tpu_custom_call.1']
    #allocation7 [shape = 'u8[4096]{0}', space=vmem, size = 0x1000, scoped, tag = 'output window, operand 0, single buffered']
    %11 = vsyncpa [#allocation3], 0
    %12 = vsyncpa [#allocation6], 0
    %13 = vsyncpa [#allocation4], 0
    // Predicated region
    $region2: #{tpu_custom_call.1} parent=1 // pred_check
      _
    $region3: #{tpu_custom_call.1} parent=1 // pred_check_branch
      %15 = sbr.rel (0) target = $region5
    $region4: #{tpu_custom_call.1} parent=1 // pred_region
      _
    $region5: #{tpu_custom_call.1} parent=1 // pred_fallthru
      _
    // Predicated region
    $region6: #{tpu_custom_call.1} parent=1 // pred_check
      _
    $region7: #{tpu_custom_call.1} parent=1 // pred_check_branch
      %17 = sbr.rel (0) target = $region9
    $region8: #{tpu_custom_call.1} parent=1 // pred_region
      _
    $region9: #{tpu_custom_call.1} parent=1 // pred_fallthru
      _
    // Predicated region
    $region10: #{tpu_custom_call.1} parent=1 // pred_check
      _
    $region11: #{tpu_custom_call.1} parent=1 // pred_check_branch
      %19 = sbr.rel (0) target = $region13
    $region12: #{tpu_custom_call.1} parent=1 // pred_region
      _
    $region13: #{tpu_custom_call.1} parent=1 // pred_fallthru
      _
    // Predicated region
    $region14: #{tpu_custom_call.1} parent=1 // pred_check
      _
    $region15: #{tpu_custom_call.1} parent=1 // pred_check_branch
      %21 = sbr.rel (0) target = $region17
    $region16: #{tpu_custom_call.1} parent=1 // pred_region
      %23 = vsyncadd [#allocation3], 0
      %s24 = sshll.u32 %s3, 4
      %s25 = int_to_ptr.hbm [resolvable:$true] %s24
      %s26 = sshll.u32 [#allocation2], 4
      %s27 = int_to_ptr.vmem [resolvable:$true] %s26
      %32 = dma.hbm_to_vmem [thread:$0]  %s25, 768, %s27, [#allocation3], 128, 128, 8
    $region17: #{tpu_custom_call.1} parent=1 // pred_fallthru
      _
    // Predicated region
    $region18: #{tpu_custom_call.1} parent=1 // pred_check
      _
    $region19: #{tpu_custom_call.1} parent=1 // pred_check_branch
      %34 = sbr.rel (0) target = $region21
    $region20: #{tpu_custom_call.1} parent=1 // pred_region
      %36 = vsyncadd [#allocation6], 0
      %s37 = sshll.u32 %s4, 4
      %s38 = int_to_ptr.hbm [resolvable:$true] %s37
      %s39 = sshll.u32 [#allocation5], 4
      %s40 = int_to_ptr.vmem [resolvable:$true] %s39
      %45 = dma.hbm_to_vmem [thread:$0]  %s38, 4096, %s40, [#allocation6], 128, 128, 8
    $region21: #{tpu_custom_call.1} parent=1 // pred_fallthru
      _
    // Predicated region
    $region22: #{tpu_custom_call.1} parent=1 // pred_check
      _
    $region23: #{tpu_custom_call.1} parent=1 // pred_check_branch
      %47 = sbr.rel (0) target = $region25
    $region24: #{tpu_custom_call.1} parent=1 // pred_region
      _
    $region25: #{tpu_custom_call.1} parent=1 // pred_fallthru
      _
    // Predicated region
    $region26: #{tpu_custom_call.1} parent=1 // pred_check
      _
    $region27: #{tpu_custom_call.1} parent=1 // pred_check_branch
      %49 = sbr.rel (0) target = $region29
    $region28: #{tpu_custom_call.1} parent=1 // pred_region
      %51 = dma.done [#allocation3], 768
    $region29: #{tpu_custom_call.1} parent=1 // pred_fallthru
      _
    // Predicated region
    $region30: #{tpu_custom_call.1} parent=1 // pred_check
      _
    $region31: #{tpu_custom_call.1} parent=1 // pred_check_branch
      %53 = sbr.rel (0) target = $region33
    $region32: #{tpu_custom_call.1} parent=1 // pred_region
      %55 = dma.done [#allocation6], 4096
    $region33: #{tpu_custom_call.1} parent=1 // pred_fallthru
      _
    %v56 = vld [vmem:[%s0] sm:$0xff]
    %v57 = vld [vmem:[%s1] sm:$0xf]
    %v58 = vld [vmem:[%s2] sm:$0x1]
    %v60 = vperm.slane %v58, 0
    %vm62 = vcmask 31744
    %v64 = vsel %vm62, %v56, 0
    %vm66 = vcmask 1043456
    %v68 = vsel %vm66, %v57, 0
    %70 = vmatpush.msra.mxu0 0.0
    %71 = vmatpush.msra.mxu0 0.0
    %72 = vmatpush.msra.mxu0 0.0
    %73 = vmatpush.msra.mxu0 0.0
    %74 = vmatpush.msra.mxu0 0.0
    %75 = vmatpush.msra.mxu0 0.0
    %76 = vmatpush.msra.mxu0 0.0
    %77 = vmatpush.msra.mxu0 0.0
    %78 = vmatpush.msra.mxu0 0.0
    %79 = vmatpush.msra.mxu0 0.0
    %80 = vmatpush.msra.mxu0 0.0
    %81 = vmatpush.msra.mxu0 0.0
    %82 = vmatpush.msra.mxu0 0.0
    %83 = vmatpush.msra.mxu0 0.0
    %84 = vmatpush.msra.mxu0 0.0
    %85 = vmatpush.msra.mxu0 %v68
    %86 = vmatmul.f32.gmra.mxu0 %v64
    %v87 = vpop.f32.mrf.mxu0
    %v88 = vadd.f32 %v60, %v87
    %89 = vdwg.mxu0
    %v90 = vmax.f32 %v88, 0.0
    %v91 = vmul.f32 %v90, %v90
    %93 = vrot.lane.b32.xlu0 %v91, 120
    %v94 = vpop.permute.xlu0 %93
    %v96 = vadd.f32 %v91, %v94
    %97 = vrot.lane.b32.xlu0 %v91, 112
    %v98 = vpop.permute.xlu0 %97
    %v100 = vadd.f32 %v96, %v98
    %101 = vrot.lane.b32.xlu0 %v91, 104
    %v102 = vpop.permute.xlu0 %101
    %v104 = vadd.f32 %v100, %v102
    %v105 = vmul.f32 %v104, 0.25
    %v106 = vrsqrt.pop %v105
    %v107 = vmul.f32 %v106, %v105
    %v108 = vmul.f32 %v107, %v106
    %v109 = vmul.f32 0.5, %v108
    %v110 = vsub.f32 1.5, %v109
    %v111 = vmul.f32 %v106, %v110
    %v112 = vmul.f32 %v105, %v111
    %vm113 = vcmp.eq.f32.partialorder %v105, inf
    %v114 = vsel %vm113, %v105, %v112
    %vm115 = vcmp.eq.f32.partialorder %v105, 0.0
    %v116 = vand.u32 %v105, 2147483648
    %v117 = vsel %vm115, %v116, %v114
    %v118 = vadd.f32 %v117, 1e-07
    %120 = vrot.lane.b32.xlu0 %v118, 8
    %v121 = vpop.permute.xlu0 %120
    %123 = vrot.lane.b32.xlu0 %v118, 16
    %v124 = vpop.permute.xlu0 %123
    %126 = vrot.lane.b32.xlu0 %v118, 24
    %v127 = vpop.permute.xlu0 %126
    %vm129 = vcmask 64512
    %v130 = vsel %vm129, %v118, %v121
    %vm131 = vcmask 130048
    %v132 = vsel %vm131, %v130, %v124
    %vm133 = vcmask 195584
    %v134 = vsel %vm133, %v132, %v127
    %v135 = vrcp.pop %v134
    %v136 = vmul.f32 %v134, %v135
    %v137 = vsub.f32 1.0, %v136
    %v138 = vmul.f32 %v135, %v137
    %v139 = vadd.f32 %v135, %v138
    %vm140 = vweird.f32 %v134
    %vm141 = vweird.f32 %v135
    %vm142 = vmor %vm140, %vm141
    %v143 = vsel %vm142, %v135, %v139
    %v144 = vand.u32 2147483647, %v134
    %vm145 = vcmp.eq.f32.partialorder %v144, 8.507059e+37
    %v146 = vand.u32 %v134, 2147483648
    %v147 = vor.u32 1.1754944e-38, %v146
    %v148 = vsel %vm145, %v147, %v143
    %v149 = vmul.f32 %v90, %v148
    %150 = vrot.lane.b32.xlu0 %v118, 96
    %v151 = vpop.permute.xlu0 %150
    %153 = vrot.lane.b32.xlu0 %v118, 104
    %v154 = vpop.permute.xlu0 %153
    %156 = vrot.lane.b32.xlu0 %v118, 112
    %v157 = vpop.permute.xlu0 %156
    %159 = vrot.lane.b32.xlu0 %v118, 120
    %v160 = vpop.permute.xlu0 %159
    %v162 = vsel %vm129, %v151, %v154
    %v163 = vsel %vm131, %v162, %v157
    %v164 = vsel %vm133, %v163, %v160
    %166 = vrot.lane.b32.xlu0 %v164, 32
    %v167 = vpop.permute.xlu0 %166
    %v169 = vrcp.pop %v167
    %v170 = vmul.f32 %v167, %v169
    %v171 = vsub.f32 1.0, %v170
    %v172 = vmul.f32 %v169, %v171
    %v173 = vadd.f32 %v169, %v172
    %vm174 = vweird.f32 %v167
    %vm175 = vweird.f32 %v169
    %vm176 = vmor %vm174, %vm175
    %v177 = vsel %vm176, %v169, %v173
    %v178 = vand.u32 2147483647, %v167
    %vm179 = vcmp.eq.f32.partialorder %v178, 8.507059e+37
    %v180 = vand.u32 %v167, 2147483648
    %v181 = vor.u32 1.1754944e-38, %v180
    %v182 = vsel %vm179, %v181, %v177
    %v183 = vmul.f32 %v90, %v182
    %v184 = vmul.f32 %v183, %v183
    %186 = vrot.lane.b32.xlu0 %v184, 96
    %v187 = vpop.permute.xlu0 %186
    %v189 = vsel %vm129, %v187, 0.0
    %190 = vadd.xlane.f32.xlu0 %v189
    %v191 = vpop.xlane.xlu0 %190
    %193 = vrot.lane.b32.xlu0 %v183, 120
    %v194 = vpop.permute.xlu0 %193
    %v196 = vmul.f32 %v183, %v194
    %198 = vrot.lane.b32.xlu0 %v196, 96
    %v199 = vpop.permute.xlu0 %198
    %v201 = vsel %vm129, %v199, 0.0
    %202 = vadd.xlane.f32.xlu0 %v201
    %v203 = vpop.xlane.xlu0 %202
    %204 = vrot.lane.b32.xlu0 %v183, 112
    %v205 = vpop.permute.xlu0 %204
    %v207 = vmul.f32 %v183, %v205
    %209 = vrot.lane.b32.xlu0 %v207, 96
    %v210 = vpop.permute.xlu0 %209
    %v212 = vsel %vm129, %v210, 0.0
    %213 = vadd.xlane.f32.xlu0 %v212
    %v214 = vpop.xlane.xlu0 %213
    %215 = vrot.lane.b32.xlu0 %v183, 104
    %v216 = vpop.permute.xlu0 %215
    %v218 = vmul.f32 %v183, %v216
    %220 = vrot.lane.b32.xlu0 %v218, 96
    %v221 = vpop.permute.xlu0 %220
    %v223 = vsel %vm129, %v221, 0.0
    %224 = vadd.xlane.f32.xlu0 %v223
    %v225 = vpop.xlane.xlu0 %224
    %226 = vrot.lane.b32.xlu0 %v184, 88
    %v227 = vpop.permute.xlu0 %226
    %v229 = vsel %vm129, %v227, 0.0
    %230 = vadd.xlane.f32.xlu0 %v229
    %v231 = vpop.xlane.xlu0 %230
    %232 = vrot.lane.b32.xlu0 %v196, 88
    %v233 = vpop.permute.xlu0 %232
    %v235 = vsel %vm129, %v233, 0.0
    %236 = vadd.xlane.f32.xlu0 %v235
    %v237 = vpop.xlane.xlu0 %236
    %238 = vrot.lane.b32.xlu0 %v207, 88
    %v239 = vpop.permute.xlu0 %238
    %v241 = vsel %vm129, %v239, 0.0
    %242 = vadd.xlane.f32.xlu0 %v241
    %v243 = vpop.xlane.xlu0 %242
    %244 = vrot.lane.b32.xlu0 %v184, 80
    %v245 = vpop.permute.xlu0 %244
    %v247 = vsel %vm129, %v245, 0.0
    %248 = vadd.xlane.f32.xlu0 %v247
    %v249 = vpop.xlane.xlu0 %248
    %250 = vrot.lane.b32.xlu0 %v196, 80
    %v251 = vpop.permute.xlu0 %250
    %v253 = vsel %vm129, %v251, 0.0
    %254 = vadd.xlane.f32.xlu0 %v253
    %v255 = vpop.xlane.xlu0 %254
    %256 = vrot.lane.b32.xlu0 %v184, 72
    %v257 = vpop.permute.xlu0 %256
    %v259 = vsel %vm129, %v257, 0.0
    %260 = vadd.xlane.f32.xlu0 %v259
    %v261 = vpop.xlane.xlu0 %260
    %vm262 = vcmask 261120
    %v263 = vsel %vm262, %v149, %v191
    %vm264 = vcmask 269312
    %v265 = vsel %vm264, %v263, %v203
    %vm266 = vcmask 277504
    %v267 = vsel %vm266, %v265, %v214
    %vm268 = vcmask 285696
    %v269 = vsel %vm268, %v267, %v225
    %vm270 = vcmask 293888
    %v271 = vsel %vm270, %v269, %v203
    %vm272 = vcmask 302080
    %v273 = vsel %vm272, %v271, %v231
    %vm274 = vcmask 310272
    %v275 = vsel %vm274, %v273, %v237
    %vm276 = vcmask 318464
    %v277 = vsel %vm276, %v275, %v243
    %vm278 = vcmask 326656
    %v279 = vsel %vm278, %v277, %v214
    %vm280 = vcmask 334848
    %v281 = vsel %vm280, %v279, %v237
    %vm282 = vcmask 343040
    %v283 = vsel %vm282, %v281, %v249
    %vm284 = vcmask 351232
    %v285 = vsel %vm284, %v283, %v255
    %vm286 = vcmask 359424
    %v287 = vsel %vm286, %v285, %v225
    %vm288 = vcmask 367616
    %v289 = vsel %vm288, %v287, %v243
    %vm290 = vcmask 375808
    %v291 = vsel %vm290, %v289, %v255
    %vm292 = vcmask 384000
    %v293 = vsel %vm292, %v291, %v261
    %v294 = vld [vmem:[#allocation2] sm:$0xff]
    %v295 = vld [vmem:[#allocation2 + $0x8] sm:$0xff]
    %v296 = vld [vmem:[#allocation2 + $0x10] sm:$0xff]
    %v297 = vld [vmem:[#allocation2 + $0x18] sm:$0xff]
    %v298 = vld [vmem:[#allocation2 + $0x20] sm:$0xff]
    %v299 = vld [vmem:[#allocation2 + $0x28] sm:$0xff]
    %v300 = vld [vmem:[%s5] sm:$0x1]
    %v302 = vperm.slane %v300, 0
    %vm304 = vcmask 392192
    %v306 = vsel %vm304, %v293, 0
    %308 = vmatpush.msra.mxu0 0.0
    %309 = vmatpush.msra.mxu0 0.0
    %310 = vmatpush.msra.mxu0 0.0
    %311 = vmatpush.msra.mxu0 0.0
    %312 = vmatpush.msra.mxu0 0.0
    %313 = vmatpush.msra.mxu0 0.0
    %314 = vmatpush.msra.mxu0 0.0
    %315 = vmatpush.msra.mxu0 0.0
    %316 = vmatpush.msra.mxu0 0.0
    %317 = vmatpush.msra.mxu0 0.0
    %318 = vmatpush.msra.mxu0 %v299
    %319 = vmatpush.msra.mxu0 %v298
    %320 = vmatpush.msra.mxu0 %v297
    %321 = vmatpush.msra.mxu0 %v296
    %322 = vmatpush.msra.mxu0 %v295
    %323 = vmatpush.msra.mxu0 %v294
    %324 = vmatmul.f32.gmra.mxu0 %v306
    %v325 = vpop.f32.mrf.mxu0
    %v326 = vadd.f32 %v302, %v325
    %327 = vdwg.mxu0
    %v328 = vmax.f32 %v326, 0.0
    %v329 = vld [vmem:[#allocation5] sm:$0xff]
    %v330 = vld [vmem:[#allocation5 + $0x8] sm:$0xff]
    %v331 = vld [vmem:[#allocation5 + $0x10] sm:$0xff]
    %v332 = vld [vmem:[#allocation5 + $0x18] sm:$0xff]
    %v333 = vld [vmem:[#allocation5 + $0x20] sm:$0xff]
    %v334 = vld [vmem:[#allocation5 + $0x28] sm:$0xff]
    %v335 = vld [vmem:[#allocation5 + $0x30] sm:$0xff]
    %v336 = vld [vmem:[#allocation5 + $0x38] sm:$0xff]
    %v337 = vld [vmem:[#allocation5 + $0x40] sm:$0xff]
    %v338 = vld [vmem:[#allocation5 + $0x48] sm:$0xff]
    %v339 = vld [vmem:[#allocation5 + $0x50] sm:$0xff]
    %v340 = vld [vmem:[#allocation5 + $0x58] sm:$0xff]
    %v341 = vld [vmem:[#allocation5 + $0x60] sm:$0xff]
    %v342 = vld [vmem:[#allocation5 + $0x68] sm:$0xff]
    %v343 = vld [vmem:[#allocation5 + $0x70] sm:$0xff]
    %v344 = vld [vmem:[#allocation5 + $0x78] sm:$0xff]
    %v345 = vld [vmem:[%s5 + $0x1] sm:$0x1]
    %v347 = vperm.slane %v345, 0
    %349 = vmatpush.msra.mxu0 %v344
    %350 = vmatpush.msra.mxu0 %v343
    %351 = vmatpush.msra.mxu0 %v342
    %352 = vmatpush.msra.mxu0 %v341
    %353 = vmatpush.msra.mxu0 %v340
    %354 = vmatpush.msra.mxu0 %v339
    %355 = vmatpush.msra.mxu0 %v338
    %356 = vmatpush.msra.mxu0 %v337
    %357 = vmatpush.msra.mxu0 %v336
    %358 = vmatpush.msra.mxu0 %v335
    %359 = vmatpush.msra.mxu0 %v334
    %360 = vmatpush.msra.mxu0 %v333
    %361 = vmatpush.msra.mxu0 %v332
    %362 = vmatpush.msra.mxu0 %v331
    %363 = vmatpush.msra.mxu0 %v330
    %364 = vmatpush.msra.mxu0 %v329
    %365 = vmatmul.f32.gmra.mxu0 %v328
    %v366 = vpop.f32.mrf.mxu0
    %v367 = vadd.f32 %v347, %v366
    %368 = vdwg.mxu0
    %v369 = vmax.f32 %v367, 0.0
    %v370 = vld [vmem:[#allocation5 + $0x80] sm:$0xff]
    %v371 = vld [vmem:[#allocation5 + $0x88] sm:$0xff]
    %v372 = vld [vmem:[#allocation5 + $0x90] sm:$0xff]
    %v373 = vld [vmem:[#allocation5 + $0x98] sm:$0xff]
    %v374 = vld [vmem:[#allocation5 + $0xa0] sm:$0xff]
    %v375 = vld [vmem:[#allocation5 + $0xa8] sm:$0xff]
    %v376 = vld [vmem:[#allocation5 + $0xb0] sm:$0xff]
    %v377 = vld [vmem:[#allocation5 + $0xb8] sm:$0xff]
    %v378 = vld [vmem:[#allocation5 + $0xc0] sm:$0xff]
    %v379 = vld [vmem:[#allocation5 + $0xc8] sm:$0xff]
    %v380 = vld [vmem:[#allocation5 + $0xd0] sm:$0xff]
    %v381 = vld [vmem:[#allocation5 + $0xd8] sm:$0xff]
    %v382 = vld [vmem:[#allocation5 + $0xe0] sm:$0xff]
    %v383 = vld [vmem:[#allocation5 + $0xe8] sm:$0xff]
    %v384 = vld [vmem:[#allocation5 + $0xf0] sm:$0xff]
    %v385 = vld [vmem:[#allocation5 + $0xf8] sm:$0xff]
    %v386 = vld [vmem:[%s5 + $0x2] sm:$0x1]
    %v388 = vperm.slane %v386, 0
    %390 = vmatpush.msra.mxu0 %v385
    %391 = vmatpush.msra.mxu0 %v384
    %392 = vmatpush.msra.mxu0 %v383
    %393 = vmatpush.msra.mxu0 %v382
    %394 = vmatpush.msra.mxu0 %v381
    %395 = vmatpush.msra.mxu0 %v380
    %396 = vmatpush.msra.mxu0 %v379
    %397 = vmatpush.msra.mxu0 %v378
    %398 = vmatpush.msra.mxu0 %v377
    %399 = vmatpush.msra.mxu0 %v376
    %400 = vmatpush.msra.mxu0 %v375
    %401 = vmatpush.msra.mxu0 %v374
    %402 = vmatpush.msra.mxu0 %v373
    %403 = vmatpush.msra.mxu0 %v372
    %404 = vmatpush.msra.mxu0 %v371
    %405 = vmatpush.msra.mxu0 %v370
    %406 = vmatmul.f32.gmra.mxu0 %v369
    %v407 = vpop.f32.mrf.mxu0
    %v408 = vadd.f32 %v388, %v407
    %409 = vdwg.mxu0
    %410 = vst [vmem:[#allocation7] sm:$0xff] %v408
    // Predicated region
    $region34: #{tpu_custom_call.1} parent=1 // pred_check
      _
    $region35: #{tpu_custom_call.1} parent=1 // pred_check_branch
      %412 = sbr.rel (0) target = $region37
    $region36: #{tpu_custom_call.1} parent=1 // pred_region
      %414 = vsyncadd [#allocation4], 0
      %s416 = sshll.u32 [#allocation7], 4
      %s417 = int_to_ptr.vmem [resolvable:$true] %s416
      %s418 = sshll.u32 %s6, 4
      %s419 = int_to_ptr.hbm [resolvable:$true] %s418
      %421 = dma.vmem_to_hbm [thread:$0]  %s417, 128, %s419, [#allocation4]
    $region37: #{tpu_custom_call.1} parent=1 // pred_fallthru
      _
    // Predicated region
    $region38: #{tpu_custom_call.1} parent=1 // pred_check
      _
    $region39: #{tpu_custom_call.1} parent=1 // pred_check_branch
      %423 = sbr.rel (0) target = $region41
    $region40: #{tpu_custom_call.1} parent=1 // pred_region
      %425 = dma.done [#allocation4], 128
    $region41: #{tpu_custom_call.1} parent=1 // pred_fallthru
      _
    %426 = vsyncpa [#allocation3], 1
    %427 = vsyncpa [#allocation6], 1
    %428 = vsyncpa [#allocation4], 1

</llo_original>
